<compile_context>
chip_gen: v5e
topology: v5e:2x2
jax: 0.10.0
libtpu: 0.0.40
codegen_flags: <defaults>
</compile_context>

<pallas_src>
import functools
import math

import jax
import jax.numpy as jnp
from jax.experimental import pallas as pl
from jax.experimental.pallas import tpu as pltpu


def _grn_kernel(x_ref, gamma_ref, beta_ref, o_ref, *, eps: float, k: int, c: int):
    """x_ref/o_ref: (B, HW_pad//k, k*C). gamma_ref/beta_ref: (1, k*C)."""
    x = x_ref[...]                                   # (B, HWk, CL), native dtype
    xf = x.astype(jnp.float32)

    # Per-lane sum of squares over the spatial (sublane) axis, f32 accumulation.
    # (On v7x, if a bundle dump ever shows the VALU slot saturating, this is
    # the place to shave: square in bf16 / move the reduction onto the MXU.)
    ss = jnp.sum(xf * xf, axis=1)                    # (B, k*C)

    # Fold the k lane-groups down to per-channel sums: summing all k rotations
    # by multiples of C leaves, at lane (j*C + ch), the total over all j for
    # channel ch -- i.e. the per-channel result already replicated k times, so
    # no re-broadcast is needed for the apply. Rolls run on the XLU (free slot).
    folded = ss
    for m in range(1, k):
        folded = folded + pltpu.roll(ss, shift=m * c, axis=1)

    gx = jnp.sqrt(folded)                            # (B, k*C): Gx per channel, replicated
    # Each channel appears exactly k times, so the mean over all k*C lanes
    # equals the mean over the C channels.
    mean_gx = jnp.mean(gx, axis=-1, keepdims=True)   # (B, 1)
    nx = gx * pl.reciprocal(mean_gx + eps, approx=True)   # (B, k*C), f32

    gamma = gamma_ref[...]                           # (1, k*C), already in apply dtype
    beta = beta_ref[...]

    if jnp.dtype(x_ref.dtype) == jnp.dtype(jnp.bfloat16):
        # bf16 apply (native bf16 VALU on v6e/v7x); stats above stayed in f32.
        nx_b = nx.astype(jnp.bfloat16)[:, None, :]
        out = gamma * (x * nx_b) + beta + x
    else:
        out = gamma * (xf * nx[:, None, :]) + beta + xf

    o_ref[...] = out.astype(o_ref.dtype)


def _block_target_bytes() -> int:
    """Per-step block byte target, tuned per TPU generation."""
    try:
        info = pltpu.get_tpu_info()
        vmem = getattr(info, "vmem_capacity_bytes", None)
        if vmem is not None and vmem <= (64 << 20):
            # v7x: 3.2 TB/s HBM per TC -> the ~0.35 us per-step overhead is a
            # large fraction of a 2 MiB step; 4 MiB blocks cut it below ~10%
            # while double-buffered in+out (16 MiB) stays under the 32 MiB
            # default scoped-VMEM limit.
            return 4 << 20
    except Exception:
        pass
    # v5e / v6e (or unknown): 2 MiB is ~85% of HBM roofline and stays well
    # inside v5e's 16 MiB default scoped VMEM once double-buffered.
    return 2 << 20


def _pick_batch_block(n: int, per_image_bytes: int, target_bytes: int) -> int:
    """Largest divisor of n whose block fits the byte target, capped so the
    grid keeps >= ~8 steps (pipelining + v7x megacore sharding)."""
    b_cap = max(1, n // 8)
    best = 1
    for d in range(2, n + 1):
        if n % d == 0 and d <= b_cap and d * per_image_bytes <= target_bytes:
            best = d
    return best


def grn_forward(x, gamma, beta, eps=1e-6):
    """GRN forward. x: (N, H, W, C) NHWC; gamma/beta: (1, 1, 1, C)."""
    N, H, W, C = x.shape
    HW = H * W
    itemsize = jnp.dtype(x.dtype).itemsize

    # Lane-folding factor: make the lane axis a multiple of 128 when C < 128
    # (or C not a multiple of 128), so every load/store is a full-lane vreg op.
    k = 1 if C % 128 == 0 else 128 // math.gcd(C, 128)

    # Pad HW up to a multiple of k (zero rows contribute 0 to the sum of
    # squares; padded output rows are sliced off below). This keeps the output
    # lane axis a multiple of 128 instead of falling back to masked stores.
    HW_pad = -(-HW // k) * k
    HWk = HW_pad // k
    CL = k * C

    x2 = x.reshape(N, HW, C)
    if HW_pad != HW:
        x2 = jnp.pad(x2, ((0, 0), (0, HW_pad - HW), (0, 0)))
    x2 = x2.reshape(N, HWk, CL)

    is_bf16 = jnp.dtype(x.dtype) == jnp.dtype(jnp.bfloat16)
    apply_dtype = jnp.bfloat16 if is_bf16 else jnp.float32
    g2 = jnp.tile(gamma.reshape(1, C), (1, k)).astype(apply_dtype)
    b2 = jnp.tile(beta.reshape(1, C), (1, k)).astype(apply_dtype)

    # Batch several images per grid step: big enough to approach the HBM
    # roofline, small enough to double-buffer in scoped VMEM, a divisor of N
    # (no pad/slice round trip), and capped so the grid keeps several steps.
    per_image_bytes = HW_pad * C * itemsize
    target_bytes = _block_target_bytes()
    B = _pick_batch_block(N, max(per_image_bytes, 1), target_bytes)
    # TODO(synk): for per_image_bytes >> target a two-pass HW-tiled variant
    # (stats kernel + apply kernel) would be needed to stay inside v7x VMEM;
    # not required for ConvNeXt-scale feature maps.

    grid = (N // B,)
    kernel = functools.partial(_grn_kernel, eps=float(eps), k=k, c=C)

    cost = pl.CostEstimate(
        flops=6 * N * HW_pad * C,
        transcendentals=N * (C + 1),
        bytes_accessed=2 * N * HW_pad * C * itemsize
        + 2 * CL * jnp.dtype(apply_dtype).itemsize,
    )

    out = pl.pallas_call(
        kernel,
        out_shape=jax.ShapeDtypeStruct((N, HWk, CL), x.dtype),
        grid_spec=pltpu.PrefetchScalarGridSpec(
            num_scalar_prefetch=0,
            grid=grid,
            in_specs=[
                pl.BlockSpec((B, HWk, CL), lambda n: (n, 0, 0)),
                pl.BlockSpec((1, CL), lambda n: (0, 0)),   # constant block: no re-DMA
                pl.BlockSpec((1, CL), lambda n: (0, 0)),
            ],
            out_specs=pl.BlockSpec((B, HWk, CL), lambda n: (n, 0, 0)),
        ),
        compiler_params=pltpu.CompilerParams(
            # Batch blocks are fully independent; lets megacore shard the axis.
            dimension_semantics=("parallel",),
        ),
        cost_estimate=cost,
    )(x2, g2, b2)

    out = out.reshape(N, HW_pad, C)
    if HW_pad != HW:
        out = out[:, :HW, :]
    return out.reshape(N, H, W, C)


def grn_reference(x, gamma, beta, eps=1e-6):
    # Pure-JAX reference mirroring the PyTorch forward exactly (f32, exact div).
    gx = jnp.sqrt(jnp.sum(x.astype(jnp.float32) ** 2, axis=(1, 2), keepdims=True))
    nx = gx / (jnp.mean(gx, axis=-1, keepdims=True) + eps)
    return (gamma * (x.astype(jnp.float32) * nx) + beta + x.astype(jnp.float32)).astype(x.dtype)


if __name__ == "__main__":
    key = jax.random.PRNGKey(0)
    kx, kg, kb = jax.random.split(key, 3)

    # ---- Test 1: f32, lane-folded path (C=32 -> k=4, CL=128), multi-step grid.
    N, H, W, C = 2, 8, 8, 32
    x = jax.random.normal(kx, (N, H, W, C), dtype=jnp.float32)
    # Module __init__ uses zeros (identity GRN); use small deterministic values
    # instead so the full compute path is exercised.
    gamma = 0.1 * jax.random.normal(kg, (1, 1, 1, C), dtype=jnp.float32)
    beta = 0.1 * jax.random.normal(kb, (1, 1, 1, C), dtype=jnp.float32)

    out = jax.block_until_ready(grn_forward(x, gamma, beta))
    ref = grn_reference(x, gamma, beta)
    assert out.shape == (N, H, W, C)
    # Slightly loosened vs pure f32 because of the EUP approximate reciprocal.
    assert jnp.allclose(out, ref, atol=1e-3, rtol=1e-3), "f32 mismatch vs reference"

    # ---- Test 2: odd shapes exercising the HW-padding path (HW=49, k=8, CL=384)
    # and a batch size that is not a power of two.
    N2, H2, W2, C2 = 3, 7, 7, 48
    x2 = jax.random.normal(kx, (N2, H2, W2, C2), dtype=jnp.float32)
    gamma2 = 0.1 * jax.random.normal(kg, (1, 1, 1, C2), dtype=jnp.float32)
    beta2 = 0.1 * jax.random.normal(kb, (1, 1, 1, C2), dtype=jnp.float32)
    out2 = jax.block_until_ready(grn_forward(x2, gamma2, beta2))
    ref2 = grn_reference(x2, gamma2, beta2)
    assert out2.shape == (N2, H2, W2, C2)
    assert jnp.allclose(out2, ref2, atol=1e-3, rtol=1e-3), "odd-shape mismatch vs reference"

    # ---- Test 3: bf16 path (f32 stats, bf16 apply) with bf16-appropriate tolerance.
    xb = x.astype(jnp.bfloat16)
    outb = jax.block_until_ready(grn_forward(xb, gamma, beta))
    refb = grn_reference(xb, gamma, beta).astype(jnp.float32)
    assert jnp.allclose(outb.astype(jnp.float32), refb, atol=5e-2, rtol=5e-2), \
        "bf16 mismatch vs reference"

    print("KERNEL_OK")
</pallas_src>

<mosaic_0001>
module attributes {stable_mosaic.version = 11 : i64} {
  func.func @_grn_kernel(%arg0: i32, %arg1: memref<1x16x128xf32, #tpu.memory_space<vmem>>, %arg2: memref<1x128xf32, #tpu.memory_space<vmem>>, %arg3: memref<1x128xf32, #tpu.memory_space<vmem>>, %arg4: memref<1x16x128xf32, #tpu.memory_space<vmem>>) attributes {dimension_semantics = [#tpu.dimension_semantics<parallel>], iteration_bounds = array<i64: 2>, scalar_prefetch = 0 : i64, scratch_operands = 0 : i64, tpu.core_type = #tpu.core_type<tc>, window_params = [{transform_indices = @transform_0, window_bounds = array<i64: 1, 16, 128>}, {pipeline_mode = #tpu.pipeline_mode<synchronous>, transform_indices = @transform_1, window_bounds = array<i64: 1, 128>}, {pipeline_mode = #tpu.pipeline_mode<synchronous>, transform_indices = @transform_2, window_bounds = array<i64: 1, 128>}, {transform_indices = @transform_3, window_bounds = array<i64: 1, 16, 128>}]} {
    %c0 = arith.constant 0 : index
    %c0_0 = arith.constant 0 : index
    %c0_1 = arith.constant 0 : index
    %0 = vector.load %arg1[%c0, %c0_0, %c0_1] : memref<1x16x128xf32, #tpu.memory_space<vmem>>, vector<1x16x128xf32>
    %1 = arith.mulf %0, %0 : vector<1x16x128xf32>
    %cst = arith.constant dense<0.000000e+00> : vector<1x128xf32>
    %2 = vector.multi_reduction <add>, %1, %cst [1] : vector<1x16x128xf32> to vector<1x128xf32>
    %c32_i32 = arith.constant 32 : i32
    %3 = tpu.dynamic_rotate %2 by %c32_i32 dim 1 : vector<1x128xf32>, i32 -> vector<1x128xf32>
    %4 = arith.addf %2, %3 : vector<1x128xf32>
    %c64_i32 = arith.constant 64 : i32
    %5 = tpu.dynamic_rotate %2 by %c64_i32 dim 1 : vector<1x128xf32>, i32 -> vector<1x128xf32>
    %6 = arith.addf %4, %5 : vector<1x128xf32>
    %c96_i32 = arith.constant 96 : i32
    %7 = tpu.dynamic_rotate %2 by %c96_i32 dim 1 : vector<1x128xf32>, i32 -> vector<1x128xf32>
    %8 = arith.addf %6, %7 : vector<1x128xf32>
    %9 = math.sqrt %8 : vector<1x128xf32>
    %cst_2 = arith.constant dense<0.000000e+00> : vector<1xf32>
    %10 = vector.multi_reduction <add>, %9, %cst_2 [1] : vector<1x128xf32> to vector<1xf32>
    %11 = vector.shape_cast %10 : vector<1xf32> to vector<1x1xf32>
    %cst_3 = arith.constant 1.280000e+02 : f32
    %12 = vector.broadcast %cst_3 : f32 to vector<1x1xf32>
    %13 = arith.divf %11, %12 : vector<1x1xf32>
    %cst_4 = arith.constant 9.99999997E-7 : f32
    %14 = vector.broadcast %cst_4 : f32 to vector<1x1xf32>
    %15 = arith.addf %13, %14 : vector<1x1xf32>
    %16 = tpu.reciprocal %15 {approx = true} : vector<1x1xf32> -> vector<1x1xf32>
    %17 = vector.broadcast %16 : vector<1x1xf32> to vector<1x128xf32>
    %18 = arith.mulf %9, %17 : vector<1x128xf32>
    %c0_5 = arith.constant 0 : index
    %c0_6 = arith.constant 0 : index
    %19 = vector.load %arg2[%c0_5, %c0_6] : memref<1x128xf32, #tpu.memory_space<vmem>>, vector<1x128xf32>
    %c0_7 = arith.constant 0 : index
    %c0_8 = arith.constant 0 : index
    %20 = vector.load %arg3[%c0_7, %c0_8] : memref<1x128xf32, #tpu.memory_space<vmem>>, vector<1x128xf32>
    %21 = vector.shape_cast %18 : vector<1x128xf32> to vector<1x1x128xf32>
    %22 = vector.broadcast %21 : vector<1x1x128xf32> to vector<1x16x128xf32>
    %23 = arith.mulf %0, %22 : vector<1x16x128xf32>
    %24 = vector.shape_cast %19 : vector<1x128xf32> to vector<1x1x128xf32>
    %25 = vector.broadcast %24 : vector<1x1x128xf32> to vector<1x16x128xf32>
    %26 = arith.mulf %25, %23 : vector<1x16x128xf32>
    %27 = vector.shape_cast %20 : vector<1x128xf32> to vector<1x1x128xf32>
    %28 = vector.broadcast %27 : vector<1x1x128xf32> to vector<1x16x128xf32>
    %29 = arith.addf %26, %28 : vector<1x16x128xf32>
    %30 = arith.addf %29, %0 : vector<1x16x128xf32>
    %c0_9 = arith.constant 0 : index
    %c0_10 = arith.constant 0 : index
    %c0_11 = arith.constant 0 : index
    %31 = vector.load %arg4[%c0_9, %c0_10, %c0_11] : memref<1x16x128xf32, #tpu.memory_space<vmem>>, vector<1x16x128xf32>
    tpu.vector_store %arg4[%c0_9, %c0_10, %c0_11], %30 {strides = array<i32>} : memref<1x16x128xf32, #tpu.memory_space<vmem>>, vector<1x16x128xf32>,
    return
  }
  func.func @transform_0(%arg0: i32) -> (i32, i32, i32) {
    %c0_i32 = arith.constant 0 : i32
    %c0_i32_0 = arith.constant 0 : i32
    %c0_i32_1 = arith.constant 0 : i32
    return %arg0, %c0_i32, %c0_i32_0 : i32, i32, i32
  }
  func.func @transform_1(%arg0: i32) -> (i32, i32) {
    %c0_i32 = arith.constant 0 : i32
    %c0_i32_0 = arith.constant 0 : i32
    %c0_i32_1 = arith.constant 0 : i32
    return %c0_i32, %c0_i32_0 : i32, i32
  }
  func.func @transform_2(%arg0: i32) -> (i32, i32) {
    %c0_i32 = arith.constant 0 : i32
    %c0_i32_0 = arith.constant 0 : i32
    %c0_i32_1 = arith.constant 0 : i32
    return %c0_i32, %c0_i32_0 : i32, i32
  }
  func.func @transform_3(%arg0: i32) -> (i32, i32, i32) {
    %c0_i32 = arith.constant 0 : i32
    %c0_i32_0 = arith.constant 0 : i32
    %c0_i32_1 = arith.constant 0 : i32
    return %arg0, %c0_i32, %c0_i32_0 : i32, i32, i32
  }
}

</mosaic_0001>

<llo_original>
// kernel: tpu_custom_call.1
$region0: #{tpu_custom_call.1}
  #allocation0 [shape = 'u32[]', space=smem, size = 0x4, offset = 0x4, fixed_abs, tag = 'smem constant byte address 0x4 - core index']
  #allocation1 [shape = 'u32[72,128]{1,0:T(1,128)}', space=vmem, size = 0x9000, scoped, tag = 'internal scratch']
  %s0 = inlined_call_operand.hbm [shape: f32[2,16,128], index: 0, kind: input, shape index: {}]
  %s1 = inlined_call_operand.hbm [shape: f32[1,128], index: 1, kind: input, shape index: {}]
  %s2 = inlined_call_operand.vmem [shape: f32[1,128], index: 2, kind: input, shape index: {}]
  %s3 = inlined_call_operand.hbm [shape: f32[2,16,128], index: 3, kind: output, shape index: {}]
  %s4 = sld [smem:[#allocation0]]
  $region53: #{tpu_custom_call.1} parent=0
    _
  %s6 = ssub.s32 1, %s4
  %s7 = scalar_select 0, %s6, %s4
  $region1: #{tpu_custom_call.1} parent=0
    #allocation2 [shape = 'u8[16384]{0}', space=vmem, size = 0x4000, scoped, tag = 'input window, operand 0']
    #allocation3 [shape = 's32[2]{0}', space=sflag, size = 0x8, scoped, tag = 'scoped memory for tpu_custom_call.1']
    #allocation4 [shape = 's32[2]{0}', space=sflag, size = 0x8, scoped, tag = 'scoped memory for tpu_custom_call.1']
    #allocation5 [shape = 'u8[512]{0}', space=vmem, size = 0x400, scoped, tag = 'input window, operand 1, single buffered']
    #allocation6 [shape = 's32[1]{0}', space=sflag, size = 0x4, scoped, tag = 'scoped memory for tpu_custom_call.1']
    #allocation7 [shape = 'u8[16384]{0}', space=vmem, size = 0x4000, scoped, tag = 'output window, operand 0']
    %8 = vsyncpa [#allocation3], 0
    %s9 = scalar_lea.sflag [#allocation3], 1
    %10 = vsyncpa %s9, 0
    %11 = vsyncpa [#allocation6], 0
    %12 = vsyncpa [#allocation4], 0
    %s13 = scalar_lea.sflag [#allocation4], 1
    %14 = vsyncpa %s13, 0
    loop: start=0, step=1, limit=4
    $region2: #{tpu_custom_call.1} parent=1 // loop_pre_header
      _
    $region3: #{tpu_custom_call.1} parent=1 // loop_header
      %s16 = sphi 0, %s20
      %p17 = scmp.ge.s32.totalorder %s16, 4
      %s26 = sphi 0, %s28
      %s29 = sphi 0, %s26
      %s30 = sphi 0, %s29
      %s46 = sphi 0, %s30
      %s50 = sphi 0, %s50
      %s52 = sphi 0, %s50
      %s53 = sphi 0, %s52
      %s67 = sphi 0, %s53
      %s71 = sphi 0, %s71
      %s73 = sphi 0, %s71
      %s74 = sphi 0, %s73
      %s88 = sphi 0, %s74
      %s94 = sphi 0, %s96
      %s97 = sphi 0, %s94
      %s98 = sphi 0, %s97
      %s114 = sphi 0, %s98
    $region4: #{tpu_custom_call.1} parent=1 // loop_header_branch
      %19 = sbr.rel (%p17) target = $region8
    $region5: #{tpu_custom_call.1} parent=1 // loop_body
      %s21 = ssub.s32 %s16, 1
      %s22 = ssub.s32 %s16, 2
      %s23 = sadd.s32 %s16, 1
      %s24 = ssub.s32 %s16, %s23
      %p25 = scmp.eq.s32.totalorder %s24, 0
      %s27 = sadd.s32 %s26, 1
      %s28 = scalar_select %p25, %s26, %s27
      %p31 = pneg %p25
      %p32 = scmp.eq.s32.totalorder %s16, 1
      %p33 = por %p31, %p32
      %p34 = scmp.ne.s32.totalorder %s26, %s29
      %p35 = scmp.eq.s32.totalorder %s16, 0
      %p36 = por %p34, %p35
      %p37 = scmp.ne.s32.totalorder %s26, %s29
      %p38 = scmp.eq.s32.totalorder %s21, 1
      %p39 = por %p37, %p38
      %p40 = scmp.ne.s32.totalorder %s29, %s30
      %p41 = scmp.eq.s32.totalorder %s21, 0
      %p42 = por %p40, %p41
      %p43 = scmp.ne.s32.totalorder %s29, %s30
      %p44 = scmp.eq.s32.totalorder %s22, 1
      %p45 = por %p43, %p44
      %p47 = scmp.ne.s32.totalorder %s30, %s46
      %p48 = scmp.eq.s32.totalorder %s22, 0
      %p49 = por %p47, %p48
      %s51 = sadd.s32 %s50, 1
      %p54 = scmp.eq.s32.totalorder %s16, 1
      %p55 = scmp.ne.s32.totalorder %s50, %s52
      %p56 = scmp.eq.s32.totalorder %s16, 0
      %p57 = por %p55, %p56
      %p58 = scmp.ne.s32.totalorder %s50, %s52
      %p59 = scmp.eq.s32.totalorder %s21, 1
      %p60 = por %p58, %p59
      %p61 = scmp.ne.s32.totalorder %s52, %s53
      %p62 = scmp.eq.s32.totalorder %s21, 0
      %p63 = por %p61, %p62
      %p64 = scmp.ne.s32.totalorder %s52, %s53
      %p65 = scmp.eq.s32.totalorder %s22, 1
      %p66 = por %p64, %p65
      %p68 = scmp.ne.s32.totalorder %s53, %s67
      %p69 = scmp.eq.s32.totalorder %s22, 0
      %p70 = por %p68, %p69
      %s72 = sadd.s32 %s71, 1
      %p75 = scmp.eq.s32.totalorder %s16, 1
      %p76 = scmp.ne.s32.totalorder %s71, %s73
      %p77 = scmp.eq.s32.totalorder %s16, 0
      %p78 = por %p76, %p77
      %p79 = scmp.ne.s32.totalorder %s71, %s73
      %p80 = scmp.eq.s32.totalorder %s21, 1
      %p81 = por %p79, %p80
      %p82 = scmp.ne.s32.totalorder %s73, %s74
      %p83 = scmp.eq.s32.totalorder %s21, 0
      %p84 = por %p82, %p83
      %p85 = scmp.ne.s32.totalorder %s73, %s74
      %p86 = scmp.eq.s32.totalorder %s22, 1
      %p87 = por %p85, %p86
      %p89 = scmp.ne.s32.totalorder %s74, %s88
      %p90 = scmp.eq.s32.totalorder %s22, 0
      %p91 = por %p89, %p90
      %s92 = ssub.s32 %s16, %s23
      %p93 = scmp.eq.s32.totalorder %s92, 0
      %s95 = sadd.s32 %s94, 1
      %s96 = scalar_select %p93, %s94, %s95
      %p99 = pneg %p93
      %p100 = scmp.eq.s32.totalorder %s16, 1
      %p101 = por %p99, %p100
      %p102 = scmp.ne.s32.totalorder %s94, %s97
      %p103 = scmp.eq.s32.totalorder %s16, 0
      %p104 = por %p102, %p103
      %p105 = scmp.ne.s32.totalorder %s94, %s97
      %p106 = scmp.eq.s32.totalorder %s21, 1
      %p107 = por %p105, %p106
      %p108 = scmp.ne.s32.totalorder %s97, %s98
      %p109 = scmp.eq.s32.totalorder %s21, 0
      %p110 = por %p108, %p109
      %p111 = scmp.ne.s32.totalorder %s97, %s98
      %p112 = scmp.eq.s32.totalorder %s22, 1
      %p113 = por %p111, %p112
      %p115 = scmp.ne.s32.totalorder %s98, %s114
      %p116 = scmp.eq.s32.totalorder %s22, 0
      %p117 = por %p115, %p116
      %p118 = scmp.le.s32.totalorder 1, %s16
      %p119 = scmp.lt.s32.totalorder %s16, 3
      %p120 = pnand %p118, %p119
      %p121 = pneg %p120
      // Predicated region
      $region9: #{tpu_custom_call.1} parent=5 // pred_check
        _
      $region10: #{tpu_custom_call.1} parent=5 // pred_check_branch
        %123 = sbr.rel (%p120) target = $region12
      $region11: #{tpu_custom_call.1} parent=5 // pred_region
        %s124 = ssub.s32 %s16, 1
        // Predicated region
        $region13: #{tpu_custom_call.1} parent=11 // pred_check
          %p125 = pneg %p63
        $region14: #{tpu_custom_call.1} parent=11 // pred_check_branch
          %127 = sbr.rel (%p125) target = $region16
        $region15: #{tpu_custom_call.1} parent=11 // pred_region
          %129 = vsyncadd [#allocation6], 0
          %s131 = sshll.u32 %s1, 4
          %s132 = int_to_ptr.hbm [resolvable:$true] %s131
          %s133 = sshll.u32 [#allocation5], 4
          %s134 = int_to_ptr.vmem [resolvable:$true] %s133
          %136 = dma.hbm_to_vmem [thread:$0]  %s132, 16, %s134, [#allocation6]
        $region16: #{tpu_custom_call.1} parent=11 // pred_fallthru
          _
        // Predicated region
        $region17: #{tpu_custom_call.1} parent=11 // pred_check
          %p137 = pneg %p84
        $region18: #{tpu_custom_call.1} parent=11 // pred_check_branch
          %139 = sbr.rel (%p137) target = $region20
        $region19: #{tpu_custom_call.1} parent=11 // pred_region
          _
        $region20: #{tpu_custom_call.1} parent=11 // pred_fallthru
          _
      $region12: #{tpu_custom_call.1} parent=5 // pred_fallthru
        _
      %p140 = scmp.lt.s32.totalorder %s16, 2
      // Predicated region
      $region21: #{tpu_custom_call.1} parent=5 // pred_check
        %p141 = pneg %p140
      $region22: #{tpu_custom_call.1} parent=5 // pred_check_branch
        %143 = sbr.rel (%p141) target = $region24
      $region23: #{tpu_custom_call.1} parent=5 // pred_region
        // Predicated region
        $region25: #{tpu_custom_call.1} parent=23 // pred_check
          %p144 = pneg %p36
        $region26: #{tpu_custom_call.1} parent=23 // pred_check_branch
          %146 = sbr.rel (%p144) target = $region28
        $region27: #{tpu_custom_call.1} parent=23 // pred_region
          %s147 = sand.u32 %s26, 1
          %s148 = scalar_lea.sflag [#allocation3], %s147
          %s149 = sand.u32 %s26, 1
          %s150 = smul.addr %s149, 16
          %s151 = scalar_lea.vmem [#allocation2], %s150
          %153 = vsyncadd %s148, 0
          %s154 = smul.addr %s16, 2
          %s155 = smul.addr %s154, 8
          %s156 = scalar_lea.hbm %s0, %s155
          %s157 = sshll.u32 %s156, 4
          %s158 = int_to_ptr.hbm [resolvable:$true] %s157
          %s159 = sshll.u32 %s151, 4
          %s160 = int_to_ptr.vmem [resolvable:$true] %s159
          %165 = dma.hbm_to_vmem [thread:$0]  %s158, 256, %s160, %s148, 128, 128, 8
        $region28: #{tpu_custom_call.1} parent=23 // pred_fallthru
          _
      $region24: #{tpu_custom_call.1} parent=5 // pred_fallthru
        _
      %p166 = scmp.le.s32.totalorder 1, %s16
      %p167 = scmp.lt.s32.totalorder %s16, 3
      %p168 = pnand %p166, %p167
      %p169 = pneg %p168
      // Predicated region
      $region29: #{tpu_custom_call.1} parent=5 // pred_check
        _
      $region30: #{tpu_custom_call.1} parent=5 // pred_check_branch
        %171 = sbr.rel (%p168) target = $region32
      $region31: #{tpu_custom_call.1} parent=5 // pred_region
        %s172 = ssub.s32 %s16, 1
        %s173 = sand.u32 %s29, 1
        %s174 = scalar_lea.sflag [#allocation3], %s173
        %s175 = sand.u32 %s29, 1
        %s176 = smul.addr %s175, 16
        %s177 = scalar_lea.vmem [#allocation2], %s176
        // Predicated region
        $region33: #{tpu_custom_call.1} parent=31 // pred_check
          %p178 = pneg %p42
        $region34: #{tpu_custom_call.1} parent=31 // pred_check_branch
          %180 = sbr.rel (%p178) target = $region36
        $region35: #{tpu_custom_call.1} parent=31 // pred_region
          %182 = dma.done %s174, 256
        $region36: #{tpu_custom_call.1} parent=31 // pred_fallthru
          _
        // Predicated region
        $region37: #{tpu_custom_call.1} parent=31 // pred_check
          %p183 = pneg %p63
        $region38: #{tpu_custom_call.1} parent=31 // pred_check_branch
          %185 = sbr.rel (%p183) target = $region40
        $region39: #{tpu_custom_call.1} parent=31 // pred_region
          %187 = dma.done [#allocation6], 16
        $region40: #{tpu_custom_call.1} parent=31 // pred_fallthru
          _
        %s188 = sand.u32 %s29, 1
        %s189 = scalar_lea.sflag [#allocation3], %s188
        %s190 = sand.u32 %s29, 1
        %s191 = smul.addr %s190, 16
        %s192 = scalar_lea.vmem [#allocation2], %s191
        %p193 = pneg %p42
        %p194 = pneg %p39
        %p195 = pneg %p63
        %p196 = pneg %p60
        %p197 = pneg %p84
        %p198 = pneg %p81
        %p199 = pneg %p110
        %p200 = pneg %p107
        %s201 = sand.u32 %s97, 1
        %s202 = scalar_lea.sflag [#allocation4], %s201
        %s203 = sand.u32 %s97, 1
        %s204 = smul.addr %s203, 16
        %s205 = scalar_lea.vmem [#allocation7], %s204
        %v206 = vld [vmem:[%s177] sm:$0xff]
        %v207 = vld [vmem:[%s177 + $0x8] sm:$0xff]
        %v208 = vmul.f32 %v206, %v206
        %v209 = vmul.f32 %v207, %v207
        %v210 = vadd.f32 %v208, %v209
        %v211 = vrot.slane %v210, 4
        %v212 = vadd.f32 %v210, %v211
        %v213 = vrot.slane %v212, 2
        %v214 = vadd.f32 %v212, %v213
        %v215 = vrot.slane %v214, 1
        %v216 = vadd.f32 %v214, %v215
        %217 = vrot.lane.b32.xlu0 %v216, 32
        %v218 = vpop.permute.xlu0 %217
        %v219 = vadd.f32 %v216, %v218
        %220 = vrot.lane.b32.xlu0 %v216, 64
        %v221 = vpop.permute.xlu0 %220
        %v222 = vadd.f32 %v219, %v221
        %223 = vrot.lane.b32.xlu0 %v216, 96
        %v224 = vpop.permute.xlu0 %223
        %v225 = vadd.f32 %v222, %v224
        %v226 = vrsqrt.pop %v225
        %v227 = vmul.f32 %v226, %v225
        %v228 = vmul.f32 %v227, %v226
        %v229 = vmul.f32 0.5, %v228
        %v230 = vsub.f32 1.5, %v229
        %v231 = vmul.f32 %v226, %v230
        %v232 = vmul.f32 %v225, %v231
        %vm233 = vcmp.eq.f32.partialorder %v225, inf
        %v234 = vsel %vm233, %v225, %v232
        %vm235 = vcmp.eq.f32.partialorder %v225, 0.0
        %v236 = vand.u32 %v225, 2147483648
        %v237 = vsel %vm235, %v236, %v234
        %vm238 = vcmask 1040384
        %v239 = vsel %vm238, %v237, 0.0
        %240 = vadd.xlane.f32.xlu0 %v239
        %v241 = vpop.xlane.xlu0 %240
        %v242 = vrcp.pop 128.0
        %v243 = vmul.f32 128.0, %v242
        %v244 = vsub.f32 1.0, %v243
        %v245 = vmul.f32 %v242, %v244
        %v246 = vadd.f32 %v242, %v245
        %vm247 = vweird.f32 %v242
        %v248 = vsel %vm247, %v242, %v246
        %v249 = vmul.f32 %v241, %v248
        %v250 = vadd.f32 %v249, 1e-06
        %v251 = vrcp.pop %v250
        %v252 = vmul.f32 %v237, %v251
        %v253 = vld [vmem:[#allocation5] sm:$0x1]
        %v254 = vld [vmem:[%s2] sm:$0x1]
        %v255 = vperm.slane %v252, 0
        %v256 = vmul.f32 %v206, %v255
        %v257 = vmul.f32 %v207, %v255
        %v259 = vperm.slane %v253, 0
        %v261 = vmul.f32 %v259, %v256
        %v262 = vmul.f32 %v259, %v257
        %v264 = vperm.slane %v254, 0
        %v266 = vadd.f32 %v261, %v264
        %v267 = vadd.f32 %v262, %v264
        %v268 = vadd.f32 %v266, %v206
        %v269 = vadd.f32 %v267, %v207
        %270 = vst [vmem:[%s205] sm:$0xff] %v268
        %271 = vst [vmem:[%s205 + $0x8] sm:$0xff] %v269
        %s272 = sand.u32 %s97, 1
        %s273 = scalar_lea.sflag [#allocation4], %s272
        %s274 = sand.u32 %s97, 1
        %s275 = smul.addr %s274, 16
        %s276 = scalar_lea.vmem [#allocation7], %s275
        // Predicated region
        $region41: #{tpu_custom_call.1} parent=31 // pred_check
          %p277 = pneg %p107
        $region42: #{tpu_custom_call.1} parent=31 // pred_check_branch
          %279 = sbr.rel (%p277) target = $region44
        $region43: #{tpu_custom_call.1} parent=31 // pred_region
          %281 = vsyncadd %s273, 0
          %s282 = smul.addr %s21, 2
          %s283 = smul.addr %s282, 8
          %s284 = scalar_lea.hbm %s3, %s283
          %s285 = sshll.u32 %s276, 4
          %s286 = int_to_ptr.vmem [resolvable:$true] %s285
          %s287 = sshll.u32 %s284, 4
          %s288 = int_to_ptr.hbm [resolvable:$true] %s287
          %293 = dma.vmem_to_hbm [thread:$0]  %s286, 256, %s288, %s273, 128, 128, 8
        $region44: #{tpu_custom_call.1} parent=31 // pred_fallthru
          _
      $region32: #{tpu_custom_call.1} parent=5 // pred_fallthru
        _
      %p294 = scmp.le.s32.totalorder 2, %s16
      // Predicated region
      $region45: #{tpu_custom_call.1} parent=5 // pred_check
        %p295 = pneg %p294
      $region46: #{tpu_custom_call.1} parent=5 // pred_check_branch
        %297 = sbr.rel (%p295) target = $region48
      $region47: #{tpu_custom_call.1} parent=5 // pred_region
        %s298 = ssub.s32 %s16, 2
        // Predicated region
        $region49: #{tpu_custom_call.1} parent=47 // pred_check
          %p299 = pneg %p113
        $region50: #{tpu_custom_call.1} parent=47 // pred_check_branch
          %301 = sbr.rel (%p299) target = $region52
        $region51: #{tpu_custom_call.1} parent=47 // pred_region
          %s302 = sand.u32 %s98, 1
          %s303 = scalar_lea.sflag [#allocation4], %s302
          %s304 = sand.u32 %s98, 1
          %s305 = smul.addr %s304, 16
          %s306 = scalar_lea.vmem [#allocation7], %s305
          %308 = dma.done %s303, 256
        $region52: #{tpu_custom_call.1} parent=47 // pred_fallthru
          _
      $region48: #{tpu_custom_call.1} parent=5 // pred_fallthru
        _
    $region6: #{tpu_custom_call.1} parent=1 // loop_footer
      %s20 = sadd.s32 1, %s16
    $region7: #{tpu_custom_call.1} parent=1 // loop_footer_branch
      %15 = sbr.rel target = $region3
    $region8: #{tpu_custom_call.1} parent=1 // loop_exit
      _
    %309 = vsyncpa [#allocation3], 1
    %s310 = scalar_lea.sflag [#allocation3], 1
    %311 = vsyncpa %s310, 1
    %312 = vsyncpa [#allocation6], 1
    %313 = vsyncpa [#allocation4], 1
    %s314 = scalar_lea.sflag [#allocation4], 1
    %315 = vsyncpa %s314, 1

</llo_original>
